<compile_context>
chip_gen: v6e
topology: v6e:2x2x1
jax: 0.10.0
libtpu: 0.0.40
codegen_flags: <defaults>
</compile_context>

<pallas_src>
import functools

import jax
import jax.numpy as jnp
from jax.experimental import pallas as pl
from jax.experimental.pallas import tpu as pltpu

TAU = 4
HIDDEN = 10
OUT = 1  # fixed by the module (Linear(10, 1))


def _round_up(n, m):
    return ((n + m - 1) // m) * m


def _mlp_kernel(w1_ref, b1_ref, w2_ref, b2_ref, x_ref, o_ref):
    """One batch tile.

    w1_ref: SMEM (TAU*HIDDEN,) f32   (row-major [k, j] -> k*HIDDEN + j)
    b1_ref: SMEM (HIDDEN,)     f32
    w2_ref: SMEM (HIDDEN,)     f32   (OUT == 1)
    b2_ref: SMEM (1,)          f32
    x_ref : VMEM (TAU, B_TILE) f32   (batch on lanes)
    o_ref : VMEM (1,  B_TILE)  f32
    """
    x = x_ref[...].astype(jnp.float32)          # (TAU, B_TILE)
    bt = x.shape[1]

    # y = sum_j w2[j] * relu(b1[j] + sum_k w1[k, j] * x[k, :]) + b2
    # ~ (TAU + 2) * HIDDEN FMAs per lane column on the VPU; fully unrolled at
    # trace time (HIDDEN=10, TAU=4), scalars read from SMEM.
    y = jnp.full((1, bt), b2_ref[0], dtype=jnp.float32)
    for j in range(HIDDEN):
        h = jnp.full((1, bt), b1_ref[j], dtype=jnp.float32)
        for k in range(TAU):
            h = h + w1_ref[k * HIDDEN + j] * x[k:k + 1, :]
        h = jnp.maximum(h, 0.0)
        y = y + w2_ref[j] * h

    o_ref[...] = y.astype(o_ref.dtype)


@functools.partial(jax.jit, static_argnames=("b_tile",))
def net_forward(x, w1, b1, w2, b2, *, b_tile=1024):
    """x: (B, TAU) f32 -> (B, 1) f32, matching PyTorch Net.forward.

    w1: (TAU, HIDDEN), b1: (HIDDEN,)/(1,HIDDEN), w2: (HIDDEN, OUT),
    b2: (OUT,)/(1,OUT)  -- i.e. weights transposed vs PyTorch storage.
    """
    if x.ndim != 2 or x.shape[1] != TAU:
        raise ValueError(f"x must be (B, {TAU}), got {x.shape}")
    if tuple(w1.shape) != (TAU, HIDDEN):
        raise ValueError(f"w1 must be ({TAU}, {HIDDEN}) (transposed vs PyTorch), got {w1.shape}")
    if tuple(w2.shape) != (HIDDEN, OUT):
        raise ValueError(f"w2 must be ({HIDDEN}, {OUT}) (transposed vs PyTorch), got {w2.shape}")
    if b1.size != HIDDEN:
        raise ValueError(f"b1 must have {HIDDEN} elements, got shape {b1.shape}")
    if b2.size != OUT:
        raise ValueError(f"b2 must have {OUT} elements, got shape {b2.shape}")

    B = x.shape[0]

    # Lane-dense layout: batch on the last (lane) dimension, padded to the tile.
    bt = min(b_tile, _round_up(B, 128))
    b_pad = _round_up(B, bt)
    xt = jnp.transpose(x.astype(jnp.float32))            # (TAU, B)
    if b_pad != B:
        xt = jnp.pad(xt, ((0, 0), (0, b_pad - B)))       # (TAU, B_pad)

    # Flattened scalar params -> SMEM (tiny; avoids padded (8,128) VMEM tiles).
    w1_s = w1.astype(jnp.float32).reshape(-1)            # (TAU*HIDDEN,)
    b1_s = b1.astype(jnp.float32).reshape(-1)            # (HIDDEN,)
    w2_s = w2.astype(jnp.float32).reshape(-1)            # (HIDDEN,)
    b2_s = b2.astype(jnp.float32).reshape(-1)            # (1,)

    grid = (b_pad // bt,)
    smem_spec = pl.BlockSpec(memory_space=pltpu.MemorySpace.SMEM)

    flops = 2 * b_pad * (TAU * HIDDEN + HIDDEN * OUT)
    bytes_accessed = 4 * (b_pad * (TAU + OUT)
                          + TAU * HIDDEN + HIDDEN + HIDDEN * OUT + OUT)

    out_t = pl.pallas_call(
        _mlp_kernel,
        out_shape=jax.ShapeDtypeStruct((OUT, b_pad), jnp.float32),
        grid=grid,
        in_specs=[
            smem_spec,                                   # w1 (resident, SMEM)
            smem_spec,                                   # b1
            smem_spec,                                   # w2
            smem_spec,                                   # b2
            pl.BlockSpec((TAU, bt), lambda i: (0, i)),   # x tile (lane-dense)
        ],
        out_specs=pl.BlockSpec((OUT, bt), lambda i: (0, i)),
        compiler_params=pltpu.CompilerParams(
            dimension_semantics=("parallel",)),
        cost_estimate=pl.CostEstimate(
            flops=flops, transcendentals=0, bytes_accessed=bytes_accessed),
    )(w1_s, b1_s, w2_s, b2_s, xt)

    return jnp.transpose(out_t[:, :B])                   # (B, OUT)


def init_params(key):
    """Deterministic init mimicking PyTorch Linear's U(-1/sqrt(fan_in), 1/sqrt(fan_in))."""
    k1, k2, k3, k4 = jax.random.split(key, 4)
    bound1 = 1.0 / jnp.sqrt(TAU)
    bound2 = 1.0 / jnp.sqrt(HIDDEN)
    w1 = jax.random.uniform(k1, (TAU, HIDDEN), jnp.float32, -bound1, bound1)
    b1 = jax.random.uniform(k2, (HIDDEN,), jnp.float32, -bound1, bound1)
    w2 = jax.random.uniform(k3, (HIDDEN, OUT), jnp.float32, -bound2, bound2)
    b2 = jax.random.uniform(k4, (OUT,), jnp.float32, -bound2, bound2)
    return w1, b1, w2, b2


def reference_forward(x, w1, b1, w2, b2):
    h = jnp.maximum(x @ w1 + b1[None, :], 0.0)
    return h @ w2 + b2[None, :]


if __name__ == "__main__":
    key = jax.random.PRNGKey(0)
    k_params, k_x1, k_x2 = jax.random.split(key, 3)

    w1, b1, w2, b2 = init_params(k_params)

    # Small demo batch (matches the module's tau=4 feature dim).
    batch = 8
    x = jax.random.normal(k_x1, (batch, TAU), jnp.float32)
    out = jax.block_until_ready(net_forward(x, w1, b1, w2, b2))
    ref = reference_forward(x, w1, b1, w2, b2)
    assert out.shape == (batch, OUT)
    assert jnp.allclose(out, ref, atol=1e-5, rtol=1e-5)

    # Non-multiple-of-128 batch to exercise the padding / tiling path.
    batch2 = 200
    x2 = jax.random.normal(k_x2, (batch2, TAU), jnp.float32)
    out2 = jax.block_until_ready(net_forward(x2, w1, b1, w2, b2))
    ref2 = reference_forward(x2, w1, b1, w2, b2)
    assert out2.shape == (batch2, OUT)
    assert jnp.allclose(out2, ref2, atol=1e-5, rtol=1e-5)

    print("KERNEL_OK")
</pallas_src>

<mosaic_0001>
module attributes {stable_mosaic.version = 11 : i64} {
  func.func @_mlp_kernel(%arg0: i32, %arg1: memref<40xf32, #tpu.memory_space<smem>>, %arg2: memref<10xf32, #tpu.memory_space<smem>>, %arg3: memref<10xf32, #tpu.memory_space<smem>>, %arg4: memref<1xf32, #tpu.memory_space<smem>>, %arg5: memref<4x128xf32, #tpu.memory_space<vmem>>, %arg6: memref<1x128xf32, #tpu.memory_space<vmem>>) attributes {dimension_semantics = [#tpu.dimension_semantics<parallel>], iteration_bounds = array<i64: 1>, scalar_prefetch = 0 : i64, scratch_operands = 0 : i64, tpu.core_type = #tpu.core_type<tc>, window_params = [{transform_indices = @transform_0, window_bounds = array<i64: 40>}, {transform_indices = @transform_1, window_bounds = array<i64: 10>}, {transform_indices = @transform_2, window_bounds = array<i64: 10>}, {transform_indices = @transform_3, window_bounds = array<i64: 1>}, {transform_indices = @transform_4, window_bounds = array<i64: 4, 128>}, {transform_indices = @transform_5, window_bounds = array<i64: 1, 128>}]} {
    %c0 = arith.constant 0 : index
    %c0_0 = arith.constant 0 : index
    %0 = vector.load %arg5[%c0, %c0_0] : memref<4x128xf32, #tpu.memory_space<vmem>>, vector<4x128xf32>
    %c0_1 = arith.constant 0 : index
    %1 = memref.load %arg4[%c0_1] : memref<1xf32, #tpu.memory_space<smem>>
    %2 = vector.broadcast %1 : f32 to vector<1x128xf32>
    %c0_2 = arith.constant 0 : index
    %3 = memref.load %arg2[%c0_2] : memref<10xf32, #tpu.memory_space<smem>>
    %4 = vector.broadcast %3 : f32 to vector<1x128xf32>
    %c0_3 = arith.constant 0 : index
    %5 = memref.load %arg1[%c0_3] : memref<40xf32, #tpu.memory_space<smem>>
    %6 = vector.extract_strided_slice %0 {offsets = [0, 0], sizes = [1, 128], strides = [1, 1]} : vector<4x128xf32> to vector<1x128xf32>
    %7 = vector.broadcast %5 : f32 to vector<1x128xf32>
    %8 = arith.mulf %7, %6 : vector<1x128xf32>
    %9 = arith.addf %4, %8 : vector<1x128xf32>
    %c10 = arith.constant 10 : index
    %10 = memref.load %arg1[%c10] : memref<40xf32, #tpu.memory_space<smem>>
    %11 = vector.extract_strided_slice %0 {offsets = [1, 0], sizes = [1, 128], strides = [1, 1]} : vector<4x128xf32> to vector<1x128xf32>
    %12 = vector.broadcast %10 : f32 to vector<1x128xf32>
    %13 = arith.mulf %12, %11 : vector<1x128xf32>
    %14 = arith.addf %9, %13 : vector<1x128xf32>
    %c20 = arith.constant 20 : index
    %15 = memref.load %arg1[%c20] : memref<40xf32, #tpu.memory_space<smem>>
    %16 = vector.extract_strided_slice %0 {offsets = [2, 0], sizes = [1, 128], strides = [1, 1]} : vector<4x128xf32> to vector<1x128xf32>
    %17 = vector.broadcast %15 : f32 to vector<1x128xf32>
    %18 = arith.mulf %17, %16 : vector<1x128xf32>
    %19 = arith.addf %14, %18 : vector<1x128xf32>
    %c30 = arith.constant 30 : index
    %20 = memref.load %arg1[%c30] : memref<40xf32, #tpu.memory_space<smem>>
    %21 = vector.extract_strided_slice %0 {offsets = [3, 0], sizes = [1, 128], strides = [1, 1]} : vector<4x128xf32> to vector<1x128xf32>
    %22 = vector.broadcast %20 : f32 to vector<1x128xf32>
    %23 = arith.mulf %22, %21 : vector<1x128xf32>
    %24 = arith.addf %19, %23 : vector<1x128xf32>
    %cst = arith.constant 0.000000e+00 : f32
    %25 = vector.broadcast %cst : f32 to vector<1x128xf32>
    %26 = arith.maximumf %24, %25 : vector<1x128xf32>
    %c0_4 = arith.constant 0 : index
    %27 = memref.load %arg3[%c0_4] : memref<10xf32, #tpu.memory_space<smem>>
    %28 = vector.broadcast %27 : f32 to vector<1x128xf32>
    %29 = arith.mulf %28, %26 : vector<1x128xf32>
    %30 = arith.addf %2, %29 : vector<1x128xf32>
    %c1 = arith.constant 1 : index
    %31 = memref.load %arg2[%c1] : memref<10xf32, #tpu.memory_space<smem>>
    %32 = vector.broadcast %31 : f32 to vector<1x128xf32>
    %c1_5 = arith.constant 1 : index
    %33 = memref.load %arg1[%c1_5] : memref<40xf32, #tpu.memory_space<smem>>
    %34 = vector.extract_strided_slice %0 {offsets = [0, 0], sizes = [1, 128], strides = [1, 1]} : vector<4x128xf32> to vector<1x128xf32>
    %35 = vector.broadcast %33 : f32 to vector<1x128xf32>
    %36 = arith.mulf %35, %34 : vector<1x128xf32>
    %37 = arith.addf %32, %36 : vector<1x128xf32>
    %c11 = arith.constant 11 : index
    %38 = memref.load %arg1[%c11] : memref<40xf32, #tpu.memory_space<smem>>
    %39 = vector.extract_strided_slice %0 {offsets = [1, 0], sizes = [1, 128], strides = [1, 1]} : vector<4x128xf32> to vector<1x128xf32>
    %40 = vector.broadcast %38 : f32 to vector<1x128xf32>
    %41 = arith.mulf %40, %39 : vector<1x128xf32>
    %42 = arith.addf %37, %41 : vector<1x128xf32>
    %c21 = arith.constant 21 : index
    %43 = memref.load %arg1[%c21] : memref<40xf32, #tpu.memory_space<smem>>
    %44 = vector.extract_strided_slice %0 {offsets = [2, 0], sizes = [1, 128], strides = [1, 1]} : vector<4x128xf32> to vector<1x128xf32>
    %45 = vector.broadcast %43 : f32 to vector<1x128xf32>
    %46 = arith.mulf %45, %44 : vector<1x128xf32>
    %47 = arith.addf %42, %46 : vector<1x128xf32>
    %c31 = arith.constant 31 : index
    %48 = memref.load %arg1[%c31] : memref<40xf32, #tpu.memory_space<smem>>
    %49 = vector.extract_strided_slice %0 {offsets = [3, 0], sizes = [1, 128], strides = [1, 1]} : vector<4x128xf32> to vector<1x128xf32>
    %50 = vector.broadcast %48 : f32 to vector<1x128xf32>
    %51 = arith.mulf %50, %49 : vector<1x128xf32>
    %52 = arith.addf %47, %51 : vector<1x128xf32>
    %cst_6 = arith.constant 0.000000e+00 : f32
    %53 = vector.broadcast %cst_6 : f32 to vector<1x128xf32>
    %54 = arith.maximumf %52, %53 : vector<1x128xf32>
    %c1_7 = arith.constant 1 : index
    %55 = memref.load %arg3[%c1_7] : memref<10xf32, #tpu.memory_space<smem>>
    %56 = vector.broadcast %55 : f32 to vector<1x128xf32>
    %57 = arith.mulf %56, %54 : vector<1x128xf32>
    %58 = arith.addf %30, %57 : vector<1x128xf32>
    %c2 = arith.constant 2 : index
    %59 = memref.load %arg2[%c2] : memref<10xf32, #tpu.memory_space<smem>>
    %60 = vector.broadcast %59 : f32 to vector<1x128xf32>
    %c2_8 = arith.constant 2 : index
    %61 = memref.load %arg1[%c2_8] : memref<40xf32, #tpu.memory_space<smem>>
    %62 = vector.extract_strided_slice %0 {offsets = [0, 0], sizes = [1, 128], strides = [1, 1]} : vector<4x128xf32> to vector<1x128xf32>
    %63 = vector.broadcast %61 : f32 to vector<1x128xf32>
    %64 = arith.mulf %63, %62 : vector<1x128xf32>
    %65 = arith.addf %60, %64 : vector<1x128xf32>
    %c12 = arith.constant 12 : index
    %66 = memref.load %arg1[%c12] : memref<40xf32, #tpu.memory_space<smem>>
    %67 = vector.extract_strided_slice %0 {offsets = [1, 0], sizes = [1, 128], strides = [1, 1]} : vector<4x128xf32> to vector<1x128xf32>
    %68 = vector.broadcast %66 : f32 to vector<1x128xf32>
    %69 = arith.mulf %68, %67 : vector<1x128xf32>
    %70 = arith.addf %65, %69 : vector<1x128xf32>
    %c22 = arith.constant 22 : index
    %71 = memref.load %arg1[%c22] : memref<40xf32, #tpu.memory_space<smem>>
    %72 = vector.extract_strided_slice %0 {offsets = [2, 0], sizes = [1, 128], strides = [1, 1]} : vector<4x128xf32> to vector<1x128xf32>
    %73 = vector.broadcast %71 : f32 to vector<1x128xf32>
    %74 = arith.mulf %73, %72 : vector<1x128xf32>
    %75 = arith.addf %70, %74 : vector<1x128xf32>
    %c32 = arith.constant 32 : index
    %76 = memref.load %arg1[%c32] : memref<40xf32, #tpu.memory_space<smem>>
    %77 = vector.extract_strided_slice %0 {offsets = [3, 0], sizes = [1, 128], strides = [1, 1]} : vector<4x128xf32> to vector<1x128xf32>
    %78 = vector.broadcast %76 : f32 to vector<1x128xf32>
    %79 = arith.mulf %78, %77 : vector<1x128xf32>
    %80 = arith.addf %75, %79 : vector<1x128xf32>
    %cst_9 = arith.constant 0.000000e+00 : f32
    %81 = vector.broadcast %cst_9 : f32 to vector<1x128xf32>
    %82 = arith.maximumf %80, %81 : vector<1x128xf32>
    %c2_10 = arith.constant 2 : index
    %83 = memref.load %arg3[%c2_10] : memref<10xf32, #tpu.memory_space<smem>>
    %84 = vector.broadcast %83 : f32 to vector<1x128xf32>
    %85 = arith.mulf %84, %82 : vector<1x128xf32>
    %86 = arith.addf %58, %85 : vector<1x128xf32>
    %c3 = arith.constant 3 : index
    %87 = memref.load %arg2[%c3] : memref<10xf32, #tpu.memory_space<smem>>
    %88 = vector.broadcast %87 : f32 to vector<1x128xf32>
    %c3_11 = arith.constant 3 : index
    %89 = memref.load %arg1[%c3_11] : memref<40xf32, #tpu.memory_space<smem>>
    %90 = vector.extract_strided_slice %0 {offsets = [0, 0], sizes = [1, 128], strides = [1, 1]} : vector<4x128xf32> to vector<1x128xf32>
    %91 = vector.broadcast %89 : f32 to vector<1x128xf32>
    %92 = arith.mulf %91, %90 : vector<1x128xf32>
    %93 = arith.addf %88, %92 : vector<1x128xf32>
    %c13 = arith.constant 13 : index
    %94 = memref.load %arg1[%c13] : memref<40xf32, #tpu.memory_space<smem>>
    %95 = vector.extract_strided_slice %0 {offsets = [1, 0], sizes = [1, 128], strides = [1, 1]} : vector<4x128xf32> to vector<1x128xf32>
    %96 = vector.broadcast %94 : f32 to vector<1x128xf32>
    %97 = arith.mulf %96, %95 : vector<1x128xf32>
    %98 = arith.addf %93, %97 : vector<1x128xf32>
    %c23 = arith.constant 23 : index
    %99 = memref.load %arg1[%c23] : memref<40xf32, #tpu.memory_space<smem>>
    %100 = vector.extract_strided_slice %0 {offsets = [2, 0], sizes = [1, 128], strides = [1, 1]} : vector<4x128xf32> to vector<1x128xf32>
    %101 = vector.broadcast %99 : f32 to vector<1x128xf32>
    %102 = arith.mulf %101, %100 : vector<1x128xf32>
    %103 = arith.addf %98, %102 : vector<1x128xf32>
    %c33 = arith.constant 33 : index
    %104 = memref.load %arg1[%c33] : memref<40xf32, #tpu.memory_space<smem>>
    %105 = vector.extract_strided_slice %0 {offsets = [3, 0], sizes = [1, 128], strides = [1, 1]} : vector<4x128xf32> to vector<1x128xf32>
    %106 = vector.broadcast %104 : f32 to vector<1x128xf32>
    %107 = arith.mulf %106, %105 : vector<1x128xf32>
    %108 = arith.addf %103, %107 : vector<1x128xf32>
    %cst_12 = arith.constant 0.000000e+00 : f32
    %109 = vector.broadcast %cst_12 : f32 to vector<1x128xf32>
    %110 = arith.maximumf %108, %109 : vector<1x128xf32>
    %c3_13 = arith.constant 3 : index
    %111 = memref.load %arg3[%c3_13] : memref<10xf32, #tpu.memory_space<smem>>
    %112 = vector.broadcast %111 : f32 to vector<1x128xf32>
    %113 = arith.mulf %112, %110 : vector<1x128xf32>
    %114 = arith.addf %86, %113 : vector<1x128xf32>
    %c4 = arith.constant 4 : index
    %115 = memref.load %arg2[%c4] : memref<10xf32, #tpu.memory_space<smem>>
    %116 = vector.broadcast %115 : f32 to vector<1x128xf32>
    %c4_14 = arith.constant 4 : index
    %117 = memref.load %arg1[%c4_14] : memref<40xf32, #tpu.memory_space<smem>>
    %118 = vector.extract_strided_slice %0 {offsets = [0, 0], sizes = [1, 128], strides = [1, 1]} : vector<4x128xf32> to vector<1x128xf32>
    %119 = vector.broadcast %117 : f32 to vector<1x128xf32>
    %120 = arith.mulf %119, %118 : vector<1x128xf32>
    %121 = arith.addf %116, %120 : vector<1x128xf32>
    %c14 = arith.constant 14 : index
    %122 = memref.load %arg1[%c14] : memref<40xf32, #tpu.memory_space<smem>>
    %123 = vector.extract_strided_slice %0 {offsets = [1, 0], sizes = [1, 128], strides = [1, 1]} : vector<4x128xf32> to vector<1x128xf32>
    %124 = vector.broadcast %122 : f32 to vector<1x128xf32>
    %125 = arith.mulf %124, %123 : vector<1x128xf32>
    %126 = arith.addf %121, %125 : vector<1x128xf32>
    %c24 = arith.constant 24 : index
    %127 = memref.load %arg1[%c24] : memref<40xf32, #tpu.memory_space<smem>>
    %128 = vector.extract_strided_slice %0 {offsets = [2, 0], sizes = [1, 128], strides = [1, 1]} : vector<4x128xf32> to vector<1x128xf32>
    %129 = vector.broadcast %127 : f32 to vector<1x128xf32>
    %130 = arith.mulf %129, %128 : vector<1x128xf32>
    %131 = arith.addf %126, %130 : vector<1x128xf32>
    %c34 = arith.constant 34 : index
    %132 = memref.load %arg1[%c34] : memref<40xf32, #tpu.memory_space<smem>>
    %133 = vector.extract_strided_slice %0 {offsets = [3, 0], sizes = [1, 128], strides = [1, 1]} : vector<4x128xf32> to vector<1x128xf32>
    %134 = vector.broadcast %132 : f32 to vector<1x128xf32>
    %135 = arith.mulf %134, %133 : vector<1x128xf32>
    %136 = arith.addf %131, %135 : vector<1x128xf32>
    %cst_15 = arith.constant 0.000000e+00 : f32
    %137 = vector.broadcast %cst_15 : f32 to vector<1x128xf32>
    %138 = arith.maximumf %136, %137 : vector<1x128xf32>
    %c4_16 = arith.constant 4 : index
    %139 = memref.load %arg3[%c4_16] : memref<10xf32, #tpu.memory_space<smem>>
    %140 = vector.broadcast %139 : f32 to vector<1x128xf32>
    %141 = arith.mulf %140, %138 : vector<1x128xf32>
    %142 = arith.addf %114, %141 : vector<1x128xf32>
    %c5 = arith.constant 5 : index
    %143 = memref.load %arg2[%c5] : memref<10xf32, #tpu.memory_space<smem>>
    %144 = vector.broadcast %143 : f32 to vector<1x128xf32>
    %c5_17 = arith.constant 5 : index
    %145 = memref.load %arg1[%c5_17] : memref<40xf32, #tpu.memory_space<smem>>
    %146 = vector.extract_strided_slice %0 {offsets = [0, 0], sizes = [1, 128], strides = [1, 1]} : vector<4x128xf32> to vector<1x128xf32>
    %147 = vector.broadcast %145 : f32 to vector<1x128xf32>
    %148 = arith.mulf %147, %146 : vector<1x128xf32>
    %149 = arith.addf %144, %148 : vector<1x128xf32>
    %c15 = arith.constant 15 : index
    %150 = memref.load %arg1[%c15] : memref<40xf32, #tpu.memory_space<smem>>
    %151 = vector.extract_strided_slice %0 {offsets = [1, 0], sizes = [1, 128], strides = [1, 1]} : vector<4x128xf32> to vector<1x128xf32>
    %152 = vector.broadcast %150 : f32 to vector<1x128xf32>
    %153 = arith.mulf %152, %151 : vector<1x128xf32>
    %154 = arith.addf %149, %153 : vector<1x128xf32>
    %c25 = arith.constant 25 : index
    %155 = memref.load %arg1[%c25] : memref<40xf32, #tpu.memory_space<smem>>
    %156 = vector.extract_strided_slice %0 {offsets = [2, 0], sizes = [1, 128], strides = [1, 1]} : vector<4x128xf32> to vector<1x128xf32>
    %157 = vector.broadcast %155 : f32 to vector<1x128xf32>
    %158 = arith.mulf %157, %156 : vector<1x128xf32>
    %159 = arith.addf %154, %158 : vector<1x128xf32>
    %c35 = arith.constant 35 : index
    %160 = memref.load %arg1[%c35] : memref<40xf32, #tpu.memory_space<smem>>
    %161 = vector.extract_strided_slice %0 {offsets = [3, 0], sizes = [1, 128], strides = [1, 1]} : vector<4x128xf32> to vector<1x128xf32>
    %162 = vector.broadcast %160 : f32 to vector<1x128xf32>
    %163 = arith.mulf %162, %161 : vector<1x128xf32>
    %164 = arith.addf %159, %163 : vector<1x128xf32>
    %cst_18 = arith.constant 0.000000e+00 : f32
    %165 = vector.broadcast %cst_18 : f32 to vector<1x128xf32>
    %166 = arith.maximumf %164, %165 : vector<1x128xf32>
    %c5_19 = arith.constant 5 : index
    %167 = memref.load %arg3[%c5_19] : memref<10xf32, #tpu.memory_space<smem>>
    %168 = vector.broadcast %167 : f32 to vector<1x128xf32>
    %169 = arith.mulf %168, %166 : vector<1x128xf32>
    %170 = arith.addf %142, %169 : vector<1x128xf32>
    %c6 = arith.constant 6 : index
    %171 = memref.load %arg2[%c6] : memref<10xf32, #tpu.memory_space<smem>>
    %172 = vector.broadcast %171 : f32 to vector<1x128xf32>
    %c6_20 = arith.constant 6 : index
    %173 = memref.load %arg1[%c6_20] : memref<40xf32, #tpu.memory_space<smem>>
    %174 = vector.extract_strided_slice %0 {offsets = [0, 0], sizes = [1, 128], strides = [1, 1]} : vector<4x128xf32> to vector<1x128xf32>
    %175 = vector.broadcast %173 : f32 to vector<1x128xf32>
    %176 = arith.mulf %175, %174 : vector<1x128xf32>
    %177 = arith.addf %172, %176 : vector<1x128xf32>
    %c16 = arith.constant 16 : index
    %178 = memref.load %arg1[%c16] : memref<40xf32, #tpu.memory_space<smem>>
    %179 = vector.extract_strided_slice %0 {offsets = [1, 0], sizes = [1, 128], strides = [1, 1]} : vector<4x128xf32> to vector<1x128xf32>
    %180 = vector.broadcast %178 : f32 to vector<1x128xf32>
    %181 = arith.mulf %180, %179 : vector<1x128xf32>
    %182 = arith.addf %177, %181 : vector<1x128xf32>
    %c26 = arith.constant 26 : index
    %183 = memref.load %arg1[%c26] : memref<40xf32, #tpu.memory_space<smem>>
    %184 = vector.extract_strided_slice %0 {offsets = [2, 0], sizes = [1, 128], strides = [1, 1]} : vector<4x128xf32> to vector<1x128xf32>
    %185 = vector.broadcast %183 : f32 to vector<1x128xf32>
    %186 = arith.mulf %185, %184 : vector<1x128xf32>
    %187 = arith.addf %182, %186 : vector<1x128xf32>
    %c36 = arith.constant 36 : index
    %188 = memref.load %arg1[%c36] : memref<40xf32, #tpu.memory_space<smem>>
    %189 = vector.extract_strided_slice %0 {offsets = [3, 0], sizes = [1, 128], strides = [1, 1]} : vector<4x128xf32> to vector<1x128xf32>
    %190 = vector.broadcast %188 : f32 to vector<1x128xf32>
    %191 = arith.mulf %190, %189 : vector<1x128xf32>
    %192 = arith.addf %187, %191 : vector<1x128xf32>
    %cst_21 = arith.constant 0.000000e+00 : f32
    %193 = vector.broadcast %cst_21 : f32 to vector<1x128xf32>
    %194 = arith.maximumf %192, %193 : vector<1x128xf32>
    %c6_22 = arith.constant 6 : index
    %195 = memref.load %arg3[%c6_22] : memref<10xf32, #tpu.memory_space<smem>>
    %196 = vector.broadcast %195 : f32 to vector<1x128xf32>
    %197 = arith.mulf %196, %194 : vector<1x128xf32>
    %198 = arith.addf %170, %197 : vector<1x128xf32>
    %c7 = arith.constant 7 : index
    %199 = memref.load %arg2[%c7] : memref<10xf32, #tpu.memory_space<smem>>
    %200 = vector.broadcast %199 : f32 to vector<1x128xf32>
    %c7_23 = arith.constant 7 : index
    %201 = memref.load %arg1[%c7_23] : memref<40xf32, #tpu.memory_space<smem>>
    %202 = vector.extract_strided_slice %0 {offsets = [0, 0], sizes = [1, 128], strides = [1, 1]} : vector<4x128xf32> to vector<1x128xf32>
    %203 = vector.broadcast %201 : f32 to vector<1x128xf32>
    %204 = arith.mulf %203, %202 : vector<1x128xf32>
    %205 = arith.addf %200, %204 : vector<1x128xf32>
    %c17 = arith.constant 17 : index
    %206 = memref.load %arg1[%c17] : memref<40xf32, #tpu.memory_space<smem>>
    %207 = vector.extract_strided_slice %0 {offsets = [1, 0], sizes = [1, 128], strides = [1, 1]} : vector<4x128xf32> to vector<1x128xf32>
    %208 = vector.broadcast %206 : f32 to vector<1x128xf32>
    %209 = arith.mulf %208, %207 : vector<1x128xf32>
    %210 = arith.addf %205, %209 : vector<1x128xf32>
    %c27 = arith.constant 27 : index
    %211 = memref.load %arg1[%c27] : memref<40xf32, #tpu.memory_space<smem>>
    %212 = vector.extract_strided_slice %0 {offsets = [2, 0], sizes = [1, 128], strides = [1, 1]} : vector<4x128xf32> to vector<1x128xf32>
    %213 = vector.broadcast %211 : f32 to vector<1x128xf32>
    %214 = arith.mulf %213, %212 : vector<1x128xf32>
    %215 = arith.addf %210, %214 : vector<1x128xf32>
    %c37 = arith.constant 37 : index
    %216 = memref.load %arg1[%c37] : memref<40xf32, #tpu.memory_space<smem>>
    %217 = vector.extract_strided_slice %0 {offsets = [3, 0], sizes = [1, 128], strides = [1, 1]} : vector<4x128xf32> to vector<1x128xf32>
    %218 = vector.broadcast %216 : f32 to vector<1x128xf32>
    %219 = arith.mulf %218, %217 : vector<1x128xf32>
    %220 = arith.addf %215, %219 : vector<1x128xf32>
    %cst_24 = arith.constant 0.000000e+00 : f32
    %221 = vector.broadcast %cst_24 : f32 to vector<1x128xf32>
    %222 = arith.maximumf %220, %221 : vector<1x128xf32>
    %c7_25 = arith.constant 7 : index
    %223 = memref.load %arg3[%c7_25] : memref<10xf32, #tpu.memory_space<smem>>
    %224 = vector.broadcast %223 : f32 to vector<1x128xf32>
    %225 = arith.mulf %224, %222 : vector<1x128xf32>
    %226 = arith.addf %198, %225 : vector<1x128xf32>
    %c8 = arith.constant 8 : index
    %227 = memref.load %arg2[%c8] : memref<10xf32, #tpu.memory_space<smem>>
    %228 = vector.broadcast %227 : f32 to vector<1x128xf32>
    %c8_26 = arith.constant 8 : index
    %229 = memref.load %arg1[%c8_26] : memref<40xf32, #tpu.memory_space<smem>>
    %230 = vector.extract_strided_slice %0 {offsets = [0, 0], sizes = [1, 128], strides = [1, 1]} : vector<4x128xf32> to vector<1x128xf32>
    %231 = vector.broadcast %229 : f32 to vector<1x128xf32>
    %232 = arith.mulf %231, %230 : vector<1x128xf32>
    %233 = arith.addf %228, %232 : vector<1x128xf32>
    %c18 = arith.constant 18 : index
    %234 = memref.load %arg1[%c18] : memref<40xf32, #tpu.memory_space<smem>>
    %235 = vector.extract_strided_slice %0 {offsets = [1, 0], sizes = [1, 128], strides = [1, 1]} : vector<4x128xf32> to vector<1x128xf32>
    %236 = vector.broadcast %234 : f32 to vector<1x128xf32>
    %237 = arith.mulf %236, %235 : vector<1x128xf32>
    %238 = arith.addf %233, %237 : vector<1x128xf32>
    %c28 = arith.constant 28 : index
    %239 = memref.load %arg1[%c28] : memref<40xf32, #tpu.memory_space<smem>>
    %240 = vector.extract_strided_slice %0 {offsets = [2, 0], sizes = [1, 128], strides = [1, 1]} : vector<4x128xf32> to vector<1x128xf32>
    %241 = vector.broadcast %239 : f32 to vector<1x128xf32>
    %242 = arith.mulf %241, %240 : vector<1x128xf32>
    %243 = arith.addf %238, %242 : vector<1x128xf32>
    %c38 = arith.constant 38 : index
    %244 = memref.load %arg1[%c38] : memref<40xf32, #tpu.memory_space<smem>>
    %245 = vector.extract_strided_slice %0 {offsets = [3, 0], sizes = [1, 128], strides = [1, 1]} : vector<4x128xf32> to vector<1x128xf32>
    %246 = vector.broadcast %244 : f32 to vector<1x128xf32>
    %247 = arith.mulf %246, %245 : vector<1x128xf32>
    %248 = arith.addf %243, %247 : vector<1x128xf32>
    %cst_27 = arith.constant 0.000000e+00 : f32
    %249 = vector.broadcast %cst_27 : f32 to vector<1x128xf32>
    %250 = arith.maximumf %248, %249 : vector<1x128xf32>
    %c8_28 = arith.constant 8 : index
    %251 = memref.load %arg3[%c8_28] : memref<10xf32, #tpu.memory_space<smem>>
    %252 = vector.broadcast %251 : f32 to vector<1x128xf32>
    %253 = arith.mulf %252, %250 : vector<1x128xf32>
    %254 = arith.addf %226, %253 : vector<1x128xf32>
    %c9 = arith.constant 9 : index
    %255 = memref.load %arg2[%c9] : memref<10xf32, #tpu.memory_space<smem>>
    %256 = vector.broadcast %255 : f32 to vector<1x128xf32>
    %c9_29 = arith.constant 9 : index
    %257 = memref.load %arg1[%c9_29] : memref<40xf32, #tpu.memory_space<smem>>
    %258 = vector.extract_strided_slice %0 {offsets = [0, 0], sizes = [1, 128], strides = [1, 1]} : vector<4x128xf32> to vector<1x128xf32>
    %259 = vector.broadcast %257 : f32 to vector<1x128xf32>
    %260 = arith.mulf %259, %258 : vector<1x128xf32>
    %261 = arith.addf %256, %260 : vector<1x128xf32>
    %c19 = arith.constant 19 : index
    %262 = memref.load %arg1[%c19] : memref<40xf32, #tpu.memory_space<smem>>
    %263 = vector.extract_strided_slice %0 {offsets = [1, 0], sizes = [1, 128], strides = [1, 1]} : vector<4x128xf32> to vector<1x128xf32>
    %264 = vector.broadcast %262 : f32 to vector<1x128xf32>
    %265 = arith.mulf %264, %263 : vector<1x128xf32>
    %266 = arith.addf %261, %265 : vector<1x128xf32>
    %c29 = arith.constant 29 : index
    %267 = memref.load %arg1[%c29] : memref<40xf32, #tpu.memory_space<smem>>
    %268 = vector.extract_strided_slice %0 {offsets = [2, 0], sizes = [1, 128], strides = [1, 1]} : vector<4x128xf32> to vector<1x128xf32>
    %269 = vector.broadcast %267 : f32 to vector<1x128xf32>
    %270 = arith.mulf %269, %268 : vector<1x128xf32>
    %271 = arith.addf %266, %270 : vector<1x128xf32>
    %c39 = arith.constant 39 : index
    %272 = memref.load %arg1[%c39] : memref<40xf32, #tpu.memory_space<smem>>
    %273 = vector.extract_strided_slice %0 {offsets = [3, 0], sizes = [1, 128], strides = [1, 1]} : vector<4x128xf32> to vector<1x128xf32>
    %274 = vector.broadcast %272 : f32 to vector<1x128xf32>
    %275 = arith.mulf %274, %273 : vector<1x128xf32>
    %276 = arith.addf %271, %275 : vector<1x128xf32>
    %cst_30 = arith.constant 0.000000e+00 : f32
    %277 = vector.broadcast %cst_30 : f32 to vector<1x128xf32>
    %278 = arith.maximumf %276, %277 : vector<1x128xf32>
    %c9_31 = arith.constant 9 : index
    %279 = memref.load %arg3[%c9_31] : memref<10xf32, #tpu.memory_space<smem>>
    %280 = vector.broadcast %279 : f32 to vector<1x128xf32>
    %281 = arith.mulf %280, %278 : vector<1x128xf32>
    %282 = arith.addf %254, %281 : vector<1x128xf32>
    %c0_32 = arith.constant 0 : index
    %c0_33 = arith.constant 0 : index
    %283 = vector.load %arg6[%c0_32, %c0_33] : memref<1x128xf32, #tpu.memory_space<vmem>>, vector<1x128xf32>
    tpu.vector_store %arg6[%c0_32, %c0_33], %282 {strides = array<i32>} : memref<1x128xf32, #tpu.memory_space<vmem>>, vector<1x128xf32>,
    return
  }
  func.func @transform_0(%arg0: i32) -> i32 {
    %c0_i32 = arith.constant 0 : i32
    %c0_i32_0 = arith.constant 0 : i32
    return %c0_i32 : i32
  }
  func.func @transform_1(%arg0: i32) -> i32 {
    %c0_i32 = arith.constant 0 : i32
    %c0_i32_0 = arith.constant 0 : i32
    return %c0_i32 : i32
  }
  func.func @transform_2(%arg0: i32) -> i32 {
    %c0_i32 = arith.constant 0 : i32
    %c0_i32_0 = arith.constant 0 : i32
    return %c0_i32 : i32
  }
  func.func @transform_3(%arg0: i32) -> i32 {
    %c0_i32 = arith.constant 0 : i32
    %c0_i32_0 = arith.constant 0 : i32
    return %c0_i32 : i32
  }
  func.func @transform_4(%arg0: i32) -> (i32, i32) {
    %c0_i32 = arith.constant 0 : i32
    %c0_i32_0 = arith.constant 0 : i32
    return %c0_i32, %arg0 : i32, i32
  }
  func.func @transform_5(%arg0: i32) -> (i32, i32) {
    %c0_i32 = arith.constant 0 : i32
    %c0_i32_0 = arith.constant 0 : i32
    return %c0_i32, %arg0 : i32, i32
  }
}

</mosaic_0001>

<llo_original>
// kernel: net_forward.1
$region0: #{net_forward.1}
  #allocation0 [shape = 'u32[]', space=smem, size = 0x4, offset = 0x4, fixed_abs, tag = 'smem constant byte address 0x4 - core index']
  #allocation1 [shape = 'u32[144,128]{1,0:T(1,128)}', space=vmem, size = 0x12000, scoped, tag = 'internal scratch']
  #allocation2 [shape = 'f32[1]{0:T(128)S(6)}', space=smem, size = 0x200, scoped, tag = 'scoped memory for net_forward.1']
  %s0 = inlined_call_operand.vmem [shape: f32[40], index: 0, kind: input, shape index: {}]
  %s1 = inlined_call_operand.vmem [shape: f32[10], index: 1, kind: input, shape index: {}]
  %s2 = inlined_call_operand.vmem [shape: f32[10], index: 2, kind: input, shape index: {}]
  %s3 = inlined_call_operand.<no memory space> [shape: f32[1], index: 3, kind: input, shape index: {}]
  %s4 = inlined_call_operand.vmem [shape: f32[4,128], index: 4, kind: input, shape index: {}]
  %s5 = inlined_call_operand.vmem [shape: f32[1,128], index: 5, kind: output, shape index: {}]
  %s6 = sld [smem:[#allocation0]]
  $region42: #{net_forward.1} parent=0
    _
  %s8 = ssub.s32 1, %s6
  %s9 = scalar_select 0, %s8, %s6
  %10 = sst [smem:[#allocation2]] %s3
  $region1: #{net_forward.1} parent=0
    #allocation3 [shape = 'u8[512]{0}', space=smem, size = 0x200, scoped, tag = 'input window, operand 0, single buffered']
    #allocation4 [shape = 's32[1]{0}', space=sflag, size = 0x4, scoped, tag = 'scoped memory for net_forward.1']
    #allocation5 [shape = 'u8[512]{0}', space=smem, size = 0x200, scoped, tag = 'input window, operand 1, single buffered']
    #allocation6 [shape = 's32[1]{0}', space=sflag, size = 0x4, scoped, tag = 'scoped memory for net_forward.1']
    #allocation7 [shape = 'u8[512]{0}', space=smem, size = 0x200, scoped, tag = 'input window, operand 2, single buffered']
    %11 = vsyncpa [#allocation4], 0
    %12 = vsyncpa [#allocation6], 0
    // Predicated region
    $region2: #{net_forward.1} parent=1 // pred_check
      _
    $region3: #{net_forward.1} parent=1 // pred_check_branch
      %14 = sbr.rel (0) target = $region5
    $region4: #{net_forward.1} parent=1 // pred_region
      %s16 = ssub.s32 16, 16
      %17 = vsyncadd [#allocation4], %s16
      %s19 = sshll.u32 %s0, 4
      %s20 = int_to_ptr.vmem [resolvable:$true] %s19
      %22 = dma.vmem_to_smem %s20, 16, [#allocation3], [#allocation4]
    $region5: #{net_forward.1} parent=1 // pred_fallthru
      _
    // Predicated region
    $region6: #{net_forward.1} parent=1 // pred_check
      _
    $region7: #{net_forward.1} parent=1 // pred_check_branch
      %24 = sbr.rel (0) target = $region9
    $region8: #{net_forward.1} parent=1 // pred_region
      %s26 = ssub.s32 16, 16
      %27 = vsyncadd [#allocation6], %s26
      %s29 = sshll.u32 %s1, 4
      %s30 = int_to_ptr.vmem [resolvable:$true] %s29
      %32 = dma.vmem_to_smem %s30, 16, [#allocation5], [#allocation6]
    $region9: #{net_forward.1} parent=1 // pred_fallthru
      _
    // Predicated region
    $region10: #{net_forward.1} parent=1 // pred_check
      _
    $region11: #{net_forward.1} parent=1 // pred_check_branch
      %34 = sbr.rel (0) target = $region13
    $region12: #{net_forward.1} parent=1 // pred_region
      %s36 = ssub.s32 16, 16
      %37 = vsyncadd [#allocation6], %s36
      %s39 = sshll.u32 %s2, 4
      %s40 = int_to_ptr.vmem [resolvable:$true] %s39
      %42 = dma.vmem_to_smem %s40, 16, [#allocation7], [#allocation6]
    $region13: #{net_forward.1} parent=1 // pred_fallthru
      _
    // Predicated region
    $region14: #{net_forward.1} parent=1 // pred_check
      _
    $region15: #{net_forward.1} parent=1 // pred_check_branch
      %44 = sbr.rel (0) target = $region17
    $region16: #{net_forward.1} parent=1 // pred_region
      _
    $region17: #{net_forward.1} parent=1 // pred_fallthru
      _
    // Predicated region
    $region18: #{net_forward.1} parent=1 // pred_check
      _
    $region19: #{net_forward.1} parent=1 // pred_check_branch
      %46 = sbr.rel (0) target = $region21
    $region20: #{net_forward.1} parent=1 // pred_region
      _
    $region21: #{net_forward.1} parent=1 // pred_fallthru
      _
    // Predicated region
    $region22: #{net_forward.1} parent=1 // pred_check
      _
    $region23: #{net_forward.1} parent=1 // pred_check_branch
      %48 = sbr.rel (0) target = $region25
    $region24: #{net_forward.1} parent=1 // pred_region
      %49 = dma.done [#allocation4], 16
    $region25: #{net_forward.1} parent=1 // pred_fallthru
      _
    // Predicated region
    $region26: #{net_forward.1} parent=1 // pred_check
      _
    $region27: #{net_forward.1} parent=1 // pred_check_branch
      %51 = sbr.rel (0) target = $region29
    $region28: #{net_forward.1} parent=1 // pred_region
      %52 = dma.done [#allocation6], 16
    $region29: #{net_forward.1} parent=1 // pred_fallthru
      _
    // Predicated region
    $region30: #{net_forward.1} parent=1 // pred_check
      _
    $region31: #{net_forward.1} parent=1 // pred_check_branch
      %54 = sbr.rel (0) target = $region33
    $region32: #{net_forward.1} parent=1 // pred_region
      %55 = dma.done [#allocation6], 16
    $region33: #{net_forward.1} parent=1 // pred_fallthru
      _
    %56 = sfence
    %v57 = vld [vmem:[%s4] sm:$0xf]
    %s58 = sld [smem:[#allocation2]]
    %v59 = vstv %s58
    %s60 = sld [smem:[#allocation5]]
    %v61 = vstv %s60
    %s62 = sld [smem:[#allocation3]]
    %v63 = vstv %s62
    %v64 = vmul.f32 %v63, %v57
    %v65 = vadd.f32 %v61, %v64
    %s66 = sld [smem:[#allocation3 + $0xa]]
    %v67 = vstv %s66
    %v68 = vmul.f32 %v67, %v57
    %v70 = vrot.slane %v68, 1
    %v72 = vadd.f32 %v65, %v70
    %s73 = sld [smem:[#allocation3 + $0x14]]
    %v74 = vstv %s73
    %v75 = vmul.f32 %v74, %v57
    %v77 = vrot.slane %v75, 2
    %v79 = vadd.f32 %v72, %v77
    %s80 = sld [smem:[#allocation3 + $0x1e]]
    %v81 = vstv %s80
    %v82 = vmul.f32 %v81, %v57
    %v84 = vrot.slane %v82, 3
    %v86 = vadd.f32 %v79, %v84
    %v87 = vmax.f32 %v86, 0.0
    %s88 = sld [smem:[#allocation7]]
    %v89 = vstv %s88
    %v90 = vmul.f32 %v89, %v87
    %v91 = vadd.f32 %v59, %v90
    %s92 = sld [smem:[#allocation5 + $0x1]]
    %v93 = vstv %s92
    %s94 = sld [smem:[#allocation3 + $0x1]]
    %v95 = vstv %s94
    %v96 = vmul.f32 %v95, %v57
    %v97 = vadd.f32 %v93, %v96
    %s98 = sld [smem:[#allocation3 + $0xb]]
    %v99 = vstv %s98
    %v100 = vmul.f32 %v99, %v57
    %v102 = vrot.slane %v100, 1
    %v104 = vadd.f32 %v97, %v102
    %s105 = sld [smem:[#allocation3 + $0x15]]
    %v106 = vstv %s105
    %v107 = vmul.f32 %v106, %v57
    %v109 = vrot.slane %v107, 2
    %v111 = vadd.f32 %v104, %v109
    %s112 = sld [smem:[#allocation3 + $0x1f]]
    %v113 = vstv %s112
    %v114 = vmul.f32 %v113, %v57
    %v116 = vrot.slane %v114, 3
    %v118 = vadd.f32 %v111, %v116
    %v119 = vmax.f32 %v118, 0.0
    %s120 = sld [smem:[#allocation7 + $0x1]]
    %v121 = vstv %s120
    %v122 = vmul.f32 %v121, %v119
    %v123 = vadd.f32 %v91, %v122
    %s124 = sld [smem:[#allocation5 + $0x2]]
    %v125 = vstv %s124
    %s126 = sld [smem:[#allocation3 + $0x2]]
    %v127 = vstv %s126
    %v128 = vmul.f32 %v127, %v57
    %v129 = vadd.f32 %v125, %v128
    %s130 = sld [smem:[#allocation3 + $0xc]]
    %v131 = vstv %s130
    %v132 = vmul.f32 %v131, %v57
    %v134 = vrot.slane %v132, 1
    %v136 = vadd.f32 %v129, %v134
    %s137 = sld [smem:[#allocation3 + $0x16]]
    %v138 = vstv %s137
    %v139 = vmul.f32 %v138, %v57
    %v141 = vrot.slane %v139, 2
    %v143 = vadd.f32 %v136, %v141
    %s144 = sld [smem:[#allocation3 + $0x20]]
    %v145 = vstv %s144
    %v146 = vmul.f32 %v145, %v57
    %v148 = vrot.slane %v146, 3
    %v150 = vadd.f32 %v143, %v148
    %v151 = vmax.f32 %v150, 0.0
    %s152 = sld [smem:[#allocation7 + $0x2]]
    %v153 = vstv %s152
    %v154 = vmul.f32 %v153, %v151
    %v155 = vadd.f32 %v123, %v154
    %s156 = sld [smem:[#allocation5 + $0x3]]
    %v157 = vstv %s156
    %s158 = sld [smem:[#allocation3 + $0x3]]
    %v159 = vstv %s158
    %v160 = vmul.f32 %v159, %v57
    %v161 = vadd.f32 %v157, %v160
    %s162 = sld [smem:[#allocation3 + $0xd]]
    %v163 = vstv %s162
    %v164 = vmul.f32 %v163, %v57
    %v166 = vrot.slane %v164, 1
    %v168 = vadd.f32 %v161, %v166
    %s169 = sld [smem:[#allocation3 + $0x17]]
    %v170 = vstv %s169
    %v171 = vmul.f32 %v170, %v57
    %v173 = vrot.slane %v171, 2
    %v175 = vadd.f32 %v168, %v173
    %s176 = sld [smem:[#allocation3 + $0x21]]
    %v177 = vstv %s176
    %v178 = vmul.f32 %v177, %v57
    %v180 = vrot.slane %v178, 3
    %v182 = vadd.f32 %v175, %v180
    %v183 = vmax.f32 %v182, 0.0
    %s184 = sld [smem:[#allocation7 + $0x3]]
    %v185 = vstv %s184
    %v186 = vmul.f32 %v185, %v183
    %v187 = vadd.f32 %v155, %v186
    %s188 = sld [smem:[#allocation5 + $0x4]]
    %v189 = vstv %s188
    %s190 = sld [smem:[#allocation3 + $0x4]]
    %v191 = vstv %s190
    %v192 = vmul.f32 %v191, %v57
    %v193 = vadd.f32 %v189, %v192
    %s194 = sld [smem:[#allocation3 + $0xe]]
    %v195 = vstv %s194
    %v196 = vmul.f32 %v195, %v57
    %v198 = vrot.slane %v196, 1
    %v200 = vadd.f32 %v193, %v198
    %s201 = sld [smem:[#allocation3 + $0x18]]
    %v202 = vstv %s201
    %v203 = vmul.f32 %v202, %v57
    %v205 = vrot.slane %v203, 2
    %v207 = vadd.f32 %v200, %v205
    %s208 = sld [smem:[#allocation3 + $0x22]]
    %v209 = vstv %s208
    %v210 = vmul.f32 %v209, %v57
    %v212 = vrot.slane %v210, 3
    %v214 = vadd.f32 %v207, %v212
    %v215 = vmax.f32 %v214, 0.0
    %s216 = sld [smem:[#allocation7 + $0x4]]
    %v217 = vstv %s216
    %v218 = vmul.f32 %v217, %v215
    %v219 = vadd.f32 %v187, %v218
    %s220 = sld [smem:[#allocation5 + $0x5]]
    %v221 = vstv %s220
    %s222 = sld [smem:[#allocation3 + $0x5]]
    %v223 = vstv %s222
    %v224 = vmul.f32 %v223, %v57
    %v225 = vadd.f32 %v221, %v224
    %s226 = sld [smem:[#allocation3 + $0xf]]
    %v227 = vstv %s226
    %v228 = vmul.f32 %v227, %v57
    %v230 = vrot.slane %v228, 1
    %v232 = vadd.f32 %v225, %v230
    %s233 = sld [smem:[#allocation3 + $0x19]]
    %v234 = vstv %s233
    %v235 = vmul.f32 %v234, %v57
    %v237 = vrot.slane %v235, 2
    %v239 = vadd.f32 %v232, %v237
    %s240 = sld [smem:[#allocation3 + $0x23]]
    %v241 = vstv %s240
    %v242 = vmul.f32 %v241, %v57
    %v244 = vrot.slane %v242, 3
    %v246 = vadd.f32 %v239, %v244
    %v247 = vmax.f32 %v246, 0.0
    %s248 = sld [smem:[#allocation7 + $0x5]]
    %v249 = vstv %s248
    %v250 = vmul.f32 %v249, %v247
    %v251 = vadd.f32 %v219, %v250
    %s252 = sld [smem:[#allocation5 + $0x6]]
    %v253 = vstv %s252
    %s254 = sld [smem:[#allocation3 + $0x6]]
    %v255 = vstv %s254
    %v256 = vmul.f32 %v255, %v57
    %v257 = vadd.f32 %v253, %v256
    %s258 = sld [smem:[#allocation3 + $0x10]]
    %v259 = vstv %s258
    %v260 = vmul.f32 %v259, %v57
    %v262 = vrot.slane %v260, 1
    %v264 = vadd.f32 %v257, %v262
    %s265 = sld [smem:[#allocation3 + $0x1a]]
    %v266 = vstv %s265
    %v267 = vmul.f32 %v266, %v57
    %v269 = vrot.slane %v267, 2
    %v271 = vadd.f32 %v264, %v269
    %s272 = sld [smem:[#allocation3 + $0x24]]
    %v273 = vstv %s272
    %v274 = vmul.f32 %v273, %v57
    %v276 = vrot.slane %v274, 3
    %v278 = vadd.f32 %v271, %v276
    %v279 = vmax.f32 %v278, 0.0
    %s280 = sld [smem:[#allocation7 + $0x6]]
    %v281 = vstv %s280
    %v282 = vmul.f32 %v281, %v279
    %v283 = vadd.f32 %v251, %v282
    %s284 = sld [smem:[#allocation5 + $0x7]]
    %v285 = vstv %s284
    %s286 = sld [smem:[#allocation3 + $0x7]]
    %v287 = vstv %s286
    %v288 = vmul.f32 %v287, %v57
    %v289 = vadd.f32 %v285, %v288
    %s290 = sld [smem:[#allocation3 + $0x11]]
    %v291 = vstv %s290
    %v292 = vmul.f32 %v291, %v57
    %v294 = vrot.slane %v292, 1
    %v296 = vadd.f32 %v289, %v294
    %s297 = sld [smem:[#allocation3 + $0x1b]]
    %v298 = vstv %s297
    %v299 = vmul.f32 %v298, %v57
    %v301 = vrot.slane %v299, 2
    %v303 = vadd.f32 %v296, %v301
    %s304 = sld [smem:[#allocation3 + $0x25]]
    %v305 = vstv %s304
    %v306 = vmul.f32 %v305, %v57
    %v308 = vrot.slane %v306, 3
    %v310 = vadd.f32 %v303, %v308
    %v311 = vmax.f32 %v310, 0.0
    %s312 = sld [smem:[#allocation7 + $0x7]]
    %v313 = vstv %s312
    %v314 = vmul.f32 %v313, %v311
    %v315 = vadd.f32 %v283, %v314
    %s316 = sld [smem:[#allocation5 + $0x8]]
    %v317 = vstv %s316
    %s318 = sld [smem:[#allocation3 + $0x8]]
    %v319 = vstv %s318
    %v320 = vmul.f32 %v319, %v57
    %v321 = vadd.f32 %v317, %v320
    %s322 = sld [smem:[#allocation3 + $0x12]]
    %v323 = vstv %s322
    %v324 = vmul.f32 %v323, %v57
    %v326 = vrot.slane %v324, 1
    %v328 = vadd.f32 %v321, %v326
    %s329 = sld [smem:[#allocation3 + $0x1c]]
    %v330 = vstv %s329
    %v331 = vmul.f32 %v330, %v57
    %v333 = vrot.slane %v331, 2
    %v335 = vadd.f32 %v328, %v333
    %s336 = sld [smem:[#allocation3 + $0x26]]
    %v337 = vstv %s336
    %v338 = vmul.f32 %v337, %v57
    %v340 = vrot.slane %v338, 3
    %v342 = vadd.f32 %v335, %v340
    %v343 = vmax.f32 %v342, 0.0
    %s344 = sld [smem:[#allocation7 + $0x8]]
    %v345 = vstv %s344
    %v346 = vmul.f32 %v345, %v343
    %v347 = vadd.f32 %v315, %v346
    %s348 = sld [smem:[#allocation5 + $0x9]]
    %v349 = vstv %s348
    %s350 = sld [smem:[#allocation3 + $0x9]]
    %v351 = vstv %s350
    %v352 = vmul.f32 %v351, %v57
    %v353 = vadd.f32 %v349, %v352
    %s354 = sld [smem:[#allocation3 + $0x13]]
    %v355 = vstv %s354
    %v356 = vmul.f32 %v355, %v57
    %v358 = vrot.slane %v356, 1
    %v360 = vadd.f32 %v353, %v358
    %s361 = sld [smem:[#allocation3 + $0x1d]]
    %v362 = vstv %s361
    %v363 = vmul.f32 %v362, %v57
    %v365 = vrot.slane %v363, 2
    %v367 = vadd.f32 %v360, %v365
    %s368 = sld [smem:[#allocation3 + $0x27]]
    %v369 = vstv %s368
    %v370 = vmul.f32 %v369, %v57
    %v372 = vrot.slane %v370, 3
    %v374 = vadd.f32 %v367, %v372
    %v375 = vmax.f32 %v374, 0.0
    %s376 = sld [smem:[#allocation7 + $0x9]]
    %v377 = vstv %s376
    %v378 = vmul.f32 %v377, %v375
    %v379 = vadd.f32 %v347, %v378
    %380 = vst [vmem:[%s5] sm:$0x1] %v379
    // Predicated region
    $region34: #{net_forward.1} parent=1 // pred_check
      _
    $region35: #{net_forward.1} parent=1 // pred_check_branch
      %382 = sbr.rel (0) target = $region37
    $region36: #{net_forward.1} parent=1 // pred_region
      _
    $region37: #{net_forward.1} parent=1 // pred_fallthru
      _
    // Predicated region
    $region38: #{net_forward.1} parent=1 // pred_check
      _
    $region39: #{net_forward.1} parent=1 // pred_check_branch
      %384 = sbr.rel (0) target = $region41
    $region40: #{net_forward.1} parent=1 // pred_region
      _
    $region41: #{net_forward.1} parent=1 // pred_fallthru
      _
    %385 = vsyncpa [#allocation4], 1
    %386 = vsyncpa [#allocation6], 1

</llo_original>
